<compile_context>
chip_gen: v5e
topology: v5e:2x2
jax: 0.10.0
libtpu: 0.0.40
codegen_flags: <defaults>
</compile_context>

<pallas_src>
import numpy as np
import jax
import jax.numpy as jnp
from jax import lax
from jax.experimental import pallas as pl
from jax.experimental.pallas import tpu as pltpu


DEFAULT_CONNECTED_MAP = np.array(
    [[True, True, True, False, False, False],
     [False, True, True, True, False, False],
     [False, False, True, True, True, False],
     [False, False, False, True, True, True],
     [True, False, False, False, True, True],
     [True, True, False, False, False, True],
     [True, True, True, True, False, False],
     [False, True, True, True, True, False],
     [False, False, True, True, True, True],
     [True, False, False, True, True, True],
     [True, True, False, False, True, True],
     [True, True, True, False, False, True],
     [True, True, False, True, True, False],
     [False, True, True, False, True, True],
     [True, False, True, True, False, True],
     [True, True, True, True, True, True]], dtype=bool)


def _round_up(v, m):
    return ((v + m - 1) // m) * m


def custom_conv_forward(x, weight, bias, ks):
    """x: (N, C_in, H, W) NCHW; weight: (C_out, C_in, ks, ks); bias: (C_out,) or None."""
    N, C_in, H, W = x.shape
    C_out = weight.shape[0]
    OH, OW = H - ks + 1, W - ks + 1
    NHW = N * H * W
    NHW_pad = _round_up(NHW, 128)            # lane dim of patch matrix / output
    CI_PAD = _round_up(C_in + 1, 8)          # +1 spare row carries the bias "ones"
    MAX_OFF = (ks - 1) * W + (ks - 1)        # largest in-kernel lane shift
    L = _round_up(NHW_pad + MAX_OFF, 128)    # lane extent of packed input rows
    K_TOT = ks * ks * CI_PAD                 # GEMM contraction dim (sublane-aligned)

    if bias is None:
        bias = jnp.zeros((C_out,), jnp.float32)

    # ---------------- wrapper-side packing (one tiny bf16 copy per operand) ----------
    # x rows: row ci, column c = n*H*W + h*W + w  (bf16 FIRST -> half the HBM traffic).
    x_rows = jnp.transpose(x.astype(jnp.bfloat16), (1, 0, 2, 3)).reshape(C_in, NHW)
    x_rows = jnp.pad(x_rows, ((0, 0), (0, L - NHW)))
    ones_row = jnp.ones((1, L), jnp.bfloat16)                    # bias carrier (ci == C_in)
    zero_rows = jnp.zeros((CI_PAD - C_in - 1, L), jnp.bfloat16)
    x_pad = jnp.concatenate([x_rows, ones_row, zero_rows], axis=0)   # (CI_PAD, L)

    # Weight matrix with K ordered (kh, kw, ci); bias folded into column (kh=0,kw=0,ci=C_in).
    w_t = jnp.transpose(weight.astype(jnp.float32), (0, 2, 3, 1))    # (C_out, ks, ks, C_in)
    w_t = jnp.pad(w_t, ((0, 0), (0, 0), (0, 0), (0, CI_PAD - C_in)))
    w_t = w_t.at[:, 0, 0, C_in].set(bias.astype(jnp.float32))
    w_mat = w_t.reshape(C_out, K_TOT).astype(jnp.bfloat16)           # (C_out, K_TOT)

    # ---------------- kernel: in-kernel im2col + single lane-dense GEMM --------------
    def kernel(x_ref, w_ref, o_ref, col_ref):
        # x_ref:(CI_PAD, L) bf16   w_ref:(C_out, K_TOT) bf16
        # o_ref:(C_out, NHW_pad) f32   col_ref:(K_TOT, NHW_pad) bf16 VMEM scratch
        xv = x_ref[...]
        b = 0
        for kh in range(ks):                 # static, unrolled at trace time
            for kw in range(ks):
                off = kh * W + kw
                # row block (kh, kw): x[n, ci, h+kh, w+kw] at column n*H*W + h*W + w
                col_ref[b * CI_PAD:(b + 1) * CI_PAD, :] = xv[:, off:off + NHW_pad]
                b += 1
        # Single MXU GEMM; bias rides along via the ones-row / bias-column.
        o_ref[...] = jnp.dot(w_ref[...], col_ref[...],
                             preferred_element_type=jnp.float32)

    out = pl.pallas_call(
        kernel,
        out_shape=jax.ShapeDtypeStruct((C_out, NHW_pad), jnp.float32),
        in_specs=[
            pl.BlockSpec((CI_PAD, L), lambda: (0, 0)),
            pl.BlockSpec((C_out, K_TOT), lambda: (0, 0)),
        ],
        out_specs=pl.BlockSpec((C_out, NHW_pad), lambda: (0, 0)),
        scratch_shapes=[pltpu.VMEM((K_TOT, NHW_pad), jnp.bfloat16)],
    )(x_pad, w_mat)

    # Columns with h >= OH or w >= OW (and NHW padding) are invalid -> sliced off here.
    out = out[:, :NHW].reshape(C_out, N, H, W)[:, :, :OH, :OW]
    return jnp.transpose(out, (1, 0, 2, 3))                      # (N, C_out, OH, OW)


def build_params(key, in_channels, out_channels, ks, connected_map):
    """Deterministic synthetic params mirroring CustomConvLayer.__init__/_create_weight."""
    keys = jax.random.split(key, out_channels + 1)
    weight = jnp.zeros((out_channels, in_channels, ks, ks), jnp.float32)
    for i, ch_conn in enumerate(connected_map):
        n_conn = int(ch_conn.sum())
        p = jax.random.normal(keys[i], (n_conn, ks, ks), jnp.float32)
        idx = np.nonzero(ch_conn)[0]
        weight = weight.at[i, idx].set(p)
    bias = jax.random.normal(keys[-1], (out_channels,), jnp.float32)
    return weight, bias


if __name__ == "__main__":
    in_channels, out_channels, ks = 6, 16, 5
    key = jax.random.PRNGKey(0)
    k_x, k_p = jax.random.split(key)

    x = jax.random.normal(k_x, (2, in_channels, 16, 16), jnp.float32)
    weight, bias = build_params(k_p, in_channels, out_channels, ks,
                                DEFAULT_CONNECTED_MAP)

    out = custom_conv_forward(x, weight, bias, ks)
    out = jax.block_until_ready(out)

    # Reference with the same bf16 operand quantization the kernel uses
    # (bf16 multiplicands incl. bias, f32 accumulation) — validates the kernel math.
    ref = lax.conv_general_dilated(
        x.astype(jnp.bfloat16), weight.astype(jnp.bfloat16),
        window_strides=(1, 1), padding="VALID",
        dimension_numbers=("NCHW", "OIHW", "NCHW"),
        preferred_element_type=jnp.float32,
    ) + bias.astype(jnp.bfloat16).astype(jnp.float32)[None, :, None, None]

    assert out.shape == (2, out_channels, 12, 12), out.shape
    np.testing.assert_allclose(np.asarray(out), np.asarray(ref),
                               rtol=2e-3, atol=2e-3)
    print("KERNEL_OK")
</pallas_src>

<mosaic_0001>
module attributes {stable_mosaic.version = 11 : i64} {
  func.func @kernel(%arg0: memref<8x640xbf16, #tpu.memory_space<vmem>>, %arg1: memref<16x200xbf16, #tpu.memory_space<vmem>>, %arg2: memref<16x512xf32, #tpu.memory_space<vmem>>, %arg3: memref<200x512xbf16, #tpu.memory_space<vmem>>) attributes {dimension_semantics = [], scalar_prefetch = 0 : i64, scratch_operands = 1 : i64, tpu.core_type = #tpu.core_type<tc>} {
    %c0 = arith.constant 0 : index
    %c0_0 = arith.constant 0 : index
    %0 = vector.load %arg0[%c0, %c0_0] : memref<8x640xbf16, #tpu.memory_space<vmem>>, vector<8x640xbf16>
    %1 = vector.extract_strided_slice %0 {offsets = [0, 0], sizes = [8, 512], strides = [1, 1]} : vector<8x640xbf16> to vector<8x512xbf16>
    %c0_1 = arith.constant 0 : index
    %c0_2 = arith.constant 0 : index
    %2 = vector.load %arg3[%c0_1, %c0_2] : memref<200x512xbf16, #tpu.memory_space<vmem>>, vector<8x512xbf16>
    tpu.vector_store %arg3[%c0_1, %c0_2], %1 {strides = array<i32>} : memref<200x512xbf16, #tpu.memory_space<vmem>>, vector<8x512xbf16>,
    %3 = vector.extract_strided_slice %0 {offsets = [0, 1], sizes = [8, 512], strides = [1, 1]} : vector<8x640xbf16> to vector<8x512xbf16>
    %c8 = arith.constant 8 : index
    %c0_3 = arith.constant 0 : index
    %4 = vector.load %arg3[%c8, %c0_3] : memref<200x512xbf16, #tpu.memory_space<vmem>>, vector<8x512xbf16>
    tpu.vector_store %arg3[%c8, %c0_3], %3 {strides = array<i32>} : memref<200x512xbf16, #tpu.memory_space<vmem>>, vector<8x512xbf16>,
    %5 = vector.extract_strided_slice %0 {offsets = [0, 2], sizes = [8, 512], strides = [1, 1]} : vector<8x640xbf16> to vector<8x512xbf16>
    %c16 = arith.constant 16 : index
    %c0_4 = arith.constant 0 : index
    %6 = vector.load %arg3[%c16, %c0_4] : memref<200x512xbf16, #tpu.memory_space<vmem>>, vector<8x512xbf16>
    tpu.vector_store %arg3[%c16, %c0_4], %5 {strides = array<i32>} : memref<200x512xbf16, #tpu.memory_space<vmem>>, vector<8x512xbf16>,
    %7 = vector.extract_strided_slice %0 {offsets = [0, 3], sizes = [8, 512], strides = [1, 1]} : vector<8x640xbf16> to vector<8x512xbf16>
    %c24 = arith.constant 24 : index
    %c0_5 = arith.constant 0 : index
    %8 = vector.load %arg3[%c24, %c0_5] : memref<200x512xbf16, #tpu.memory_space<vmem>>, vector<8x512xbf16>
    tpu.vector_store %arg3[%c24, %c0_5], %7 {strides = array<i32>} : memref<200x512xbf16, #tpu.memory_space<vmem>>, vector<8x512xbf16>,
    %9 = vector.extract_strided_slice %0 {offsets = [0, 4], sizes = [8, 512], strides = [1, 1]} : vector<8x640xbf16> to vector<8x512xbf16>
    %c32 = arith.constant 32 : index
    %c0_6 = arith.constant 0 : index
    %10 = vector.load %arg3[%c32, %c0_6] : memref<200x512xbf16, #tpu.memory_space<vmem>>, vector<8x512xbf16>
    tpu.vector_store %arg3[%c32, %c0_6], %9 {strides = array<i32>} : memref<200x512xbf16, #tpu.memory_space<vmem>>, vector<8x512xbf16>,
    %11 = vector.extract_strided_slice %0 {offsets = [0, 16], sizes = [8, 512], strides = [1, 1]} : vector<8x640xbf16> to vector<8x512xbf16>
    %c40 = arith.constant 40 : index
    %c0_7 = arith.constant 0 : index
    %12 = vector.load %arg3[%c40, %c0_7] : memref<200x512xbf16, #tpu.memory_space<vmem>>, vector<8x512xbf16>
    tpu.vector_store %arg3[%c40, %c0_7], %11 {strides = array<i32>} : memref<200x512xbf16, #tpu.memory_space<vmem>>, vector<8x512xbf16>,
    %13 = vector.extract_strided_slice %0 {offsets = [0, 17], sizes = [8, 512], strides = [1, 1]} : vector<8x640xbf16> to vector<8x512xbf16>
    %c48 = arith.constant 48 : index
    %c0_8 = arith.constant 0 : index
    %14 = vector.load %arg3[%c48, %c0_8] : memref<200x512xbf16, #tpu.memory_space<vmem>>, vector<8x512xbf16>
    tpu.vector_store %arg3[%c48, %c0_8], %13 {strides = array<i32>} : memref<200x512xbf16, #tpu.memory_space<vmem>>, vector<8x512xbf16>,
    %15 = vector.extract_strided_slice %0 {offsets = [0, 18], sizes = [8, 512], strides = [1, 1]} : vector<8x640xbf16> to vector<8x512xbf16>
    %c56 = arith.constant 56 : index
    %c0_9 = arith.constant 0 : index
    %16 = vector.load %arg3[%c56, %c0_9] : memref<200x512xbf16, #tpu.memory_space<vmem>>, vector<8x512xbf16>
    tpu.vector_store %arg3[%c56, %c0_9], %15 {strides = array<i32>} : memref<200x512xbf16, #tpu.memory_space<vmem>>, vector<8x512xbf16>,
    %17 = vector.extract_strided_slice %0 {offsets = [0, 19], sizes = [8, 512], strides = [1, 1]} : vector<8x640xbf16> to vector<8x512xbf16>
    %c64 = arith.constant 64 : index
    %c0_10 = arith.constant 0 : index
    %18 = vector.load %arg3[%c64, %c0_10] : memref<200x512xbf16, #tpu.memory_space<vmem>>, vector<8x512xbf16>
    tpu.vector_store %arg3[%c64, %c0_10], %17 {strides = array<i32>} : memref<200x512xbf16, #tpu.memory_space<vmem>>, vector<8x512xbf16>,
    %19 = vector.extract_strided_slice %0 {offsets = [0, 20], sizes = [8, 512], strides = [1, 1]} : vector<8x640xbf16> to vector<8x512xbf16>
    %c72 = arith.constant 72 : index
    %c0_11 = arith.constant 0 : index
    %20 = vector.load %arg3[%c72, %c0_11] : memref<200x512xbf16, #tpu.memory_space<vmem>>, vector<8x512xbf16>
    tpu.vector_store %arg3[%c72, %c0_11], %19 {strides = array<i32>} : memref<200x512xbf16, #tpu.memory_space<vmem>>, vector<8x512xbf16>,
    %21 = vector.extract_strided_slice %0 {offsets = [0, 32], sizes = [8, 512], strides = [1, 1]} : vector<8x640xbf16> to vector<8x512xbf16>
    %c80 = arith.constant 80 : index
    %c0_12 = arith.constant 0 : index
    %22 = vector.load %arg3[%c80, %c0_12] : memref<200x512xbf16, #tpu.memory_space<vmem>>, vector<8x512xbf16>
    tpu.vector_store %arg3[%c80, %c0_12], %21 {strides = array<i32>} : memref<200x512xbf16, #tpu.memory_space<vmem>>, vector<8x512xbf16>,
    %23 = vector.extract_strided_slice %0 {offsets = [0, 33], sizes = [8, 512], strides = [1, 1]} : vector<8x640xbf16> to vector<8x512xbf16>
    %c88 = arith.constant 88 : index
    %c0_13 = arith.constant 0 : index
    %24 = vector.load %arg3[%c88, %c0_13] : memref<200x512xbf16, #tpu.memory_space<vmem>>, vector<8x512xbf16>
    tpu.vector_store %arg3[%c88, %c0_13], %23 {strides = array<i32>} : memref<200x512xbf16, #tpu.memory_space<vmem>>, vector<8x512xbf16>,
    %25 = vector.extract_strided_slice %0 {offsets = [0, 34], sizes = [8, 512], strides = [1, 1]} : vector<8x640xbf16> to vector<8x512xbf16>
    %c96 = arith.constant 96 : index
    %c0_14 = arith.constant 0 : index
    %26 = vector.load %arg3[%c96, %c0_14] : memref<200x512xbf16, #tpu.memory_space<vmem>>, vector<8x512xbf16>
    tpu.vector_store %arg3[%c96, %c0_14], %25 {strides = array<i32>} : memref<200x512xbf16, #tpu.memory_space<vmem>>, vector<8x512xbf16>,
    %27 = vector.extract_strided_slice %0 {offsets = [0, 35], sizes = [8, 512], strides = [1, 1]} : vector<8x640xbf16> to vector<8x512xbf16>
    %c104 = arith.constant 104 : index
    %c0_15 = arith.constant 0 : index
    %28 = vector.load %arg3[%c104, %c0_15] : memref<200x512xbf16, #tpu.memory_space<vmem>>, vector<8x512xbf16>
    tpu.vector_store %arg3[%c104, %c0_15], %27 {strides = array<i32>} : memref<200x512xbf16, #tpu.memory_space<vmem>>, vector<8x512xbf16>,
    %29 = vector.extract_strided_slice %0 {offsets = [0, 36], sizes = [8, 512], strides = [1, 1]} : vector<8x640xbf16> to vector<8x512xbf16>
    %c112 = arith.constant 112 : index
    %c0_16 = arith.constant 0 : index
    %30 = vector.load %arg3[%c112, %c0_16] : memref<200x512xbf16, #tpu.memory_space<vmem>>, vector<8x512xbf16>
    tpu.vector_store %arg3[%c112, %c0_16], %29 {strides = array<i32>} : memref<200x512xbf16, #tpu.memory_space<vmem>>, vector<8x512xbf16>,
    %31 = vector.extract_strided_slice %0 {offsets = [0, 48], sizes = [8, 512], strides = [1, 1]} : vector<8x640xbf16> to vector<8x512xbf16>
    %c120 = arith.constant 120 : index
    %c0_17 = arith.constant 0 : index
    %32 = vector.load %arg3[%c120, %c0_17] : memref<200x512xbf16, #tpu.memory_space<vmem>>, vector<8x512xbf16>
    tpu.vector_store %arg3[%c120, %c0_17], %31 {strides = array<i32>} : memref<200x512xbf16, #tpu.memory_space<vmem>>, vector<8x512xbf16>,
    %33 = vector.extract_strided_slice %0 {offsets = [0, 49], sizes = [8, 512], strides = [1, 1]} : vector<8x640xbf16> to vector<8x512xbf16>
    %c128 = arith.constant 128 : index
    %c0_18 = arith.constant 0 : index
    %34 = vector.load %arg3[%c128, %c0_18] : memref<200x512xbf16, #tpu.memory_space<vmem>>, vector<8x512xbf16>
    tpu.vector_store %arg3[%c128, %c0_18], %33 {strides = array<i32>} : memref<200x512xbf16, #tpu.memory_space<vmem>>, vector<8x512xbf16>,
    %35 = vector.extract_strided_slice %0 {offsets = [0, 50], sizes = [8, 512], strides = [1, 1]} : vector<8x640xbf16> to vector<8x512xbf16>
    %c136 = arith.constant 136 : index
    %c0_19 = arith.constant 0 : index
    %36 = vector.load %arg3[%c136, %c0_19] : memref<200x512xbf16, #tpu.memory_space<vmem>>, vector<8x512xbf16>
    tpu.vector_store %arg3[%c136, %c0_19], %35 {strides = array<i32>} : memref<200x512xbf16, #tpu.memory_space<vmem>>, vector<8x512xbf16>,
    %37 = vector.extract_strided_slice %0 {offsets = [0, 51], sizes = [8, 512], strides = [1, 1]} : vector<8x640xbf16> to vector<8x512xbf16>
    %c144 = arith.constant 144 : index
    %c0_20 = arith.constant 0 : index
    %38 = vector.load %arg3[%c144, %c0_20] : memref<200x512xbf16, #tpu.memory_space<vmem>>, vector<8x512xbf16>
    tpu.vector_store %arg3[%c144, %c0_20], %37 {strides = array<i32>} : memref<200x512xbf16, #tpu.memory_space<vmem>>, vector<8x512xbf16>,
    %39 = vector.extract_strided_slice %0 {offsets = [0, 52], sizes = [8, 512], strides = [1, 1]} : vector<8x640xbf16> to vector<8x512xbf16>
    %c152 = arith.constant 152 : index
    %c0_21 = arith.constant 0 : index
    %40 = vector.load %arg3[%c152, %c0_21] : memref<200x512xbf16, #tpu.memory_space<vmem>>, vector<8x512xbf16>
    tpu.vector_store %arg3[%c152, %c0_21], %39 {strides = array<i32>} : memref<200x512xbf16, #tpu.memory_space<vmem>>, vector<8x512xbf16>,
    %41 = vector.extract_strided_slice %0 {offsets = [0, 64], sizes = [8, 512], strides = [1, 1]} : vector<8x640xbf16> to vector<8x512xbf16>
    %c160 = arith.constant 160 : index
    %c0_22 = arith.constant 0 : index
    %42 = vector.load %arg3[%c160, %c0_22] : memref<200x512xbf16, #tpu.memory_space<vmem>>, vector<8x512xbf16>
    tpu.vector_store %arg3[%c160, %c0_22], %41 {strides = array<i32>} : memref<200x512xbf16, #tpu.memory_space<vmem>>, vector<8x512xbf16>,
    %43 = vector.extract_strided_slice %0 {offsets = [0, 65], sizes = [8, 512], strides = [1, 1]} : vector<8x640xbf16> to vector<8x512xbf16>
    %c168 = arith.constant 168 : index
    %c0_23 = arith.constant 0 : index
    %44 = vector.load %arg3[%c168, %c0_23] : memref<200x512xbf16, #tpu.memory_space<vmem>>, vector<8x512xbf16>
    tpu.vector_store %arg3[%c168, %c0_23], %43 {strides = array<i32>} : memref<200x512xbf16, #tpu.memory_space<vmem>>, vector<8x512xbf16>,
    %45 = vector.extract_strided_slice %0 {offsets = [0, 66], sizes = [8, 512], strides = [1, 1]} : vector<8x640xbf16> to vector<8x512xbf16>
    %c176 = arith.constant 176 : index
    %c0_24 = arith.constant 0 : index
    %46 = vector.load %arg3[%c176, %c0_24] : memref<200x512xbf16, #tpu.memory_space<vmem>>, vector<8x512xbf16>
    tpu.vector_store %arg3[%c176, %c0_24], %45 {strides = array<i32>} : memref<200x512xbf16, #tpu.memory_space<vmem>>, vector<8x512xbf16>,
    %47 = vector.extract_strided_slice %0 {offsets = [0, 67], sizes = [8, 512], strides = [1, 1]} : vector<8x640xbf16> to vector<8x512xbf16>
    %c184 = arith.constant 184 : index
    %c0_25 = arith.constant 0 : index
    %48 = vector.load %arg3[%c184, %c0_25] : memref<200x512xbf16, #tpu.memory_space<vmem>>, vector<8x512xbf16>
    tpu.vector_store %arg3[%c184, %c0_25], %47 {strides = array<i32>} : memref<200x512xbf16, #tpu.memory_space<vmem>>, vector<8x512xbf16>,
    %49 = vector.extract_strided_slice %0 {offsets = [0, 68], sizes = [8, 512], strides = [1, 1]} : vector<8x640xbf16> to vector<8x512xbf16>
    %c192 = arith.constant 192 : index
    %c0_26 = arith.constant 0 : index
    %50 = vector.load %arg3[%c192, %c0_26] : memref<200x512xbf16, #tpu.memory_space<vmem>>, vector<8x512xbf16>
    tpu.vector_store %arg3[%c192, %c0_26], %49 {strides = array<i32>} : memref<200x512xbf16, #tpu.memory_space<vmem>>, vector<8x512xbf16>,
    %c0_27 = arith.constant 0 : index
    %c0_28 = arith.constant 0 : index
    %51 = vector.load %arg1[%c0_27, %c0_28] : memref<16x200xbf16, #tpu.memory_space<vmem>>, vector<16x200xbf16>
    %c0_29 = arith.constant 0 : index
    %c0_30 = arith.constant 0 : index
    %52 = vector.load %arg3[%c0_29, %c0_30] : memref<200x512xbf16, #tpu.memory_space<vmem>>, vector<200x512xbf16>
    %cst = arith.constant dense<0.000000e+00> : vector<16x512xf32>
    %53 = tpu.matmul %51, %52, %cst {dimension_numbers = #tpu.dot_dimension_numbers<[1], [0], [0], [1], [0, 0, 1, 1], [], []>} : vector<16x200xbf16>, vector<200x512xbf16>, vector<16x512xf32> -> vector<16x512xf32>
    %c0_31 = arith.constant 0 : index
    %c0_32 = arith.constant 0 : index
    %54 = vector.load %arg2[%c0_31, %c0_32] : memref<16x512xf32, #tpu.memory_space<vmem>>, vector<16x512xf32>
    tpu.vector_store %arg2[%c0_31, %c0_32], %53 {strides = array<i32>} : memref<16x512xf32, #tpu.memory_space<vmem>>, vector<16x512xf32>,
    return
  }
}

</mosaic_0001>

<llo_original>
// kernel: tpu_custom_call.1
$region0: #{tpu_custom_call.1}
  #allocation0 [shape = 'u32[]', space=smem, size = 0x4, offset = 0x4, fixed_abs, tag = 'smem constant byte address 0x4 - core index']
  #allocation1 [shape = 'u32[72,128]{1,0:T(1,128)}', space=vmem, size = 0x9000, scoped, tag = 'internal scratch']
  #allocation2 [shape = 'bf16[200,512]{1,0:T(8,128)(2,1)}', space=vmem, size = 0x32000, scoped, tag = 'scratch operand']
  %s0 = inlined_call_operand.hbm [shape: bf16[8,640], index: 0, kind: input, shape index: {}]
  %s1 = inlined_call_operand.hbm [shape: bf16[16,200], index: 1, kind: input, shape index: {}]
  %s2 = inlined_call_operand.hbm [shape: f32[16,512], index: 2, kind: output, shape index: {}]
  %s3 = sld [smem:[#allocation0]]
  $region26: #{tpu_custom_call.1} parent=0
    _
  %s5 = ssub.s32 1, %s3
  %s6 = scalar_select 0, %s5, %s3
  $region1: #{tpu_custom_call.1} parent=0
    #allocation3 [shape = 'u8[10240]{0}', space=vmem, size = 0x2800, scoped, tag = 'input window, operand 0, single buffered']
    #allocation4 [shape = 's32[1]{0}', space=sflag, size = 0x4, scoped, tag = 'scoped memory for tpu_custom_call.1']
    #allocation5 [shape = 's32[1]{0}', space=sflag, size = 0x4, scoped, tag = 'scoped memory for tpu_custom_call.1']
    #allocation6 [shape = 'u8[8192]{0}', space=vmem, size = 0x2000, scoped, tag = 'input window, operand 1, single buffered']
    #allocation7 [shape = 's32[1]{0}', space=sflag, size = 0x4, scoped, tag = 'scoped memory for tpu_custom_call.1']
    #allocation8 [shape = 'u8[32768]{0}', space=vmem, size = 0x8000, scoped, tag = 'output window, operand 0, single buffered']
    %7 = vsyncpa [#allocation4], 0
    %8 = vsyncpa [#allocation7], 0
    %9 = vsyncpa [#allocation5], 0
    // Predicated region
    $region2: #{tpu_custom_call.1} parent=1 // pred_check
      _
    $region3: #{tpu_custom_call.1} parent=1 // pred_check_branch
      %11 = sbr.rel (0) target = $region5
    $region4: #{tpu_custom_call.1} parent=1 // pred_region
      %13 = vsyncadd [#allocation4], 0
      %s15 = sshll.u32 %s0, 4
      %s16 = int_to_ptr.hbm [resolvable:$true] %s15
      %s17 = sshll.u32 [#allocation3], 4
      %s18 = int_to_ptr.vmem [resolvable:$true] %s17
      %20 = dma.hbm_to_vmem [thread:$0]  %s16, 320, %s18, [#allocation4]
    $region5: #{tpu_custom_call.1} parent=1 // pred_fallthru
      _
    // Predicated region
    $region6: #{tpu_custom_call.1} parent=1 // pred_check
      _
    $region7: #{tpu_custom_call.1} parent=1 // pred_check_branch
      %22 = sbr.rel (0) target = $region9
    $region8: #{tpu_custom_call.1} parent=1 // pred_region
      %24 = vsyncadd [#allocation7], 0
      %s25 = sshll.u32 %s1, 4
      %s26 = int_to_ptr.hbm [resolvable:$true] %s25
      %s27 = sshll.u32 [#allocation6], 4
      %s28 = int_to_ptr.vmem [resolvable:$true] %s27
      %33 = dma.hbm_to_vmem [thread:$0]  %s26, 256, %s28, [#allocation7], 128, 128, 8
    $region9: #{tpu_custom_call.1} parent=1 // pred_fallthru
      _
    // Predicated region
    $region10: #{tpu_custom_call.1} parent=1 // pred_check
      _
    $region11: #{tpu_custom_call.1} parent=1 // pred_check_branch
      %35 = sbr.rel (0) target = $region13
    $region12: #{tpu_custom_call.1} parent=1 // pred_region
      %37 = dma.done [#allocation4], 320
    $region13: #{tpu_custom_call.1} parent=1 // pred_fallthru
      _
    // Predicated region
    $region14: #{tpu_custom_call.1} parent=1 // pred_check
      _
    $region15: #{tpu_custom_call.1} parent=1 // pred_check_branch
      %39 = sbr.rel (0) target = $region17
    $region16: #{tpu_custom_call.1} parent=1 // pred_region
      %41 = dma.done [#allocation7], 256
    $region17: #{tpu_custom_call.1} parent=1 // pred_fallthru
      _
    %v43 = vld [vmem:[#allocation3] sm:$0xff]
    %v44 = vld [vmem:[#allocation3 + $0x8] sm:$0xff]
    %v45 = vld [vmem:[#allocation3 + $0x10] sm:$0xf]
    %46 = vst [vmem:[#allocation2] sm:$0xff] %v43
    %47 = vst [vmem:[#allocation2 + $0x8] sm:$0xff] %v44
    %51 = vrot.lane.b32.xlu0 %v43, 127
    %v52 = vpop.permute.xlu0 %51
    %53 = vrot.lane.b32.xlu0 %v44, 127
    %v54 = vpop.permute.xlu0 %53
    %55 = vrot.lane.b32.xlu0 %v45, 127
    %v56 = vpop.permute.xlu0 %55
    %v57 = vrot.slane %v52, 4
    %v58 = vrot.slane %v54, 4
    %v59 = vrot.slane %v56, 4
    %vm60 = vcmask 1043456
    %v61 = vsel %vm60, %v57, %v58
    %vm62 = vcmask 1039360
    %v63 = vsel %vm62, %v52, %v61
    %v64 = vsel %vm60, %v58, %v59
    %v65 = vsel %vm62, %v54, %v64
    %68 = vst [vmem:[#allocation2 + $0x10] sm:$0xff] %v63
    %69 = vst [vmem:[#allocation2 + $0x18] sm:$0xff] %v65
    %70 = vrot.lane.b32.xlu0 %v43, 126
    %v71 = vpop.permute.xlu0 %70
    %72 = vrot.lane.b32.xlu0 %v44, 126
    %v73 = vpop.permute.xlu0 %72
    %74 = vrot.lane.b32.xlu0 %v45, 126
    %v75 = vpop.permute.xlu0 %74
    %v76 = vrot.slane %v71, 4
    %v77 = vrot.slane %v73, 4
    %v78 = vrot.slane %v75, 4
    %v79 = vsel %vm60, %v76, %v77
    %vm80 = vcmask 1031168
    %v81 = vsel %vm80, %v71, %v79
    %v82 = vsel %vm60, %v77, %v78
    %v83 = vsel %vm80, %v73, %v82
    %86 = vst [vmem:[#allocation2 + $0x20] sm:$0xff] %v81
    %87 = vst [vmem:[#allocation2 + $0x28] sm:$0xff] %v83
    %88 = vrot.lane.b32.xlu0 %v43, 125
    %v89 = vpop.permute.xlu0 %88
    %90 = vrot.lane.b32.xlu0 %v44, 125
    %v91 = vpop.permute.xlu0 %90
    %92 = vrot.lane.b32.xlu0 %v45, 125
    %v93 = vpop.permute.xlu0 %92
    %v94 = vrot.slane %v89, 4
    %v95 = vrot.slane %v91, 4
    %v96 = vrot.slane %v93, 4
    %v97 = vsel %vm60, %v94, %v95
    %vm98 = vcmask 1022976
    %v99 = vsel %vm98, %v89, %v97
    %v100 = vsel %vm60, %v95, %v96
    %v101 = vsel %vm98, %v91, %v100
    %104 = vst [vmem:[#allocation2 + $0x30] sm:$0xff] %v99
    %105 = vst [vmem:[#allocation2 + $0x38] sm:$0xff] %v101
    %106 = vrot.lane.b32.xlu0 %v43, 124
    %v107 = vpop.permute.xlu0 %106
    %108 = vrot.lane.b32.xlu0 %v44, 124
    %v109 = vpop.permute.xlu0 %108
    %110 = vrot.lane.b32.xlu0 %v45, 124
    %v111 = vpop.permute.xlu0 %110
    %v112 = vrot.slane %v107, 4
    %v113 = vrot.slane %v109, 4
    %v114 = vrot.slane %v111, 4
    %v115 = vsel %vm60, %v112, %v113
    %vm116 = vcmask 1014784
    %v117 = vsel %vm116, %v107, %v115
    %v118 = vsel %vm60, %v113, %v114
    %v119 = vsel %vm116, %v109, %v118
    %122 = vst [vmem:[#allocation2 + $0x40] sm:$0xff] %v117
    %123 = vst [vmem:[#allocation2 + $0x48] sm:$0xff] %v119
    %124 = vrot.lane.b32.xlu0 %v43, 112
    %v125 = vpop.permute.xlu0 %124
    %126 = vrot.lane.b32.xlu0 %v44, 112
    %v127 = vpop.permute.xlu0 %126
    %128 = vrot.lane.b32.xlu0 %v45, 112
    %v129 = vpop.permute.xlu0 %128
    %v130 = vrot.slane %v125, 4
    %v131 = vrot.slane %v127, 4
    %v132 = vrot.slane %v129, 4
    %v133 = vsel %vm60, %v130, %v131
    %vm134 = vcmask 916480
    %v135 = vsel %vm134, %v125, %v133
    %v136 = vsel %vm60, %v131, %v132
    %v137 = vsel %vm134, %v127, %v136
    %140 = vst [vmem:[#allocation2 + $0x50] sm:$0xff] %v135
    %141 = vst [vmem:[#allocation2 + $0x58] sm:$0xff] %v137
    %142 = vrot.lane.b32.xlu0 %v43, 111
    %v143 = vpop.permute.xlu0 %142
    %144 = vrot.lane.b32.xlu0 %v44, 111
    %v145 = vpop.permute.xlu0 %144
    %146 = vrot.lane.b32.xlu0 %v45, 111
    %v147 = vpop.permute.xlu0 %146
    %v148 = vrot.slane %v143, 4
    %v149 = vrot.slane %v145, 4
    %v150 = vrot.slane %v147, 4
    %v151 = vsel %vm60, %v148, %v149
    %vm152 = vcmask 908288
    %v153 = vsel %vm152, %v143, %v151
    %v154 = vsel %vm60, %v149, %v150
    %v155 = vsel %vm152, %v145, %v154
    %158 = vst [vmem:[#allocation2 + $0x60] sm:$0xff] %v153
    %159 = vst [vmem:[#allocation2 + $0x68] sm:$0xff] %v155
    %160 = vrot.lane.b32.xlu0 %v43, 110
    %v161 = vpop.permute.xlu0 %160
    %162 = vrot.lane.b32.xlu0 %v44, 110
    %v163 = vpop.permute.xlu0 %162
    %164 = vrot.lane.b32.xlu0 %v45, 110
    %v165 = vpop.permute.xlu0 %164
    %v166 = vrot.slane %v161, 4
    %v167 = vrot.slane %v163, 4
    %v168 = vrot.slane %v165, 4
    %v169 = vsel %vm60, %v166, %v167
    %vm170 = vcmask 900096
    %v171 = vsel %vm170, %v161, %v169
    %v172 = vsel %vm60, %v167, %v168
    %v173 = vsel %vm170, %v163, %v172
    %176 = vst [vmem:[#allocation2 + $0x70] sm:$0xff] %v171
    %177 = vst [vmem:[#allocation2 + $0x78] sm:$0xff] %v173
    %178 = vrot.lane.b32.xlu0 %v43, 109
    %v179 = vpop.permute.xlu0 %178
    %180 = vrot.lane.b32.xlu0 %v44, 109
    %v181 = vpop.permute.xlu0 %180
    %182 = vrot.lane.b32.xlu0 %v45, 109
    %v183 = vpop.permute.xlu0 %182
    %v184 = vrot.slane %v179, 4
    %v185 = vrot.slane %v181, 4
    %v186 = vrot.slane %v183, 4
    %v187 = vsel %vm60, %v184, %v185
    %vm188 = vcmask 891904
    %v189 = vsel %vm188, %v179, %v187
    %v190 = vsel %vm60, %v185, %v186
    %v191 = vsel %vm188, %v181, %v190
    %194 = vst [vmem:[#allocation2 + $0x80] sm:$0xff] %v189
    %195 = vst [vmem:[#allocation2 + $0x88] sm:$0xff] %v191
    %196 = vrot.lane.b32.xlu0 %v43, 108
    %v197 = vpop.permute.xlu0 %196
    %198 = vrot.lane.b32.xlu0 %v44, 108
    %v199 = vpop.permute.xlu0 %198
    %200 = vrot.lane.b32.xlu0 %v45, 108
    %v201 = vpop.permute.xlu0 %200
    %v202 = vrot.slane %v197, 4
    %v203 = vrot.slane %v199, 4
    %v204 = vrot.slane %v201, 4
    %v205 = vsel %vm60, %v202, %v203
    %vm206 = vcmask 883712
    %v207 = vsel %vm206, %v197, %v205
    %v208 = vsel %vm60, %v203, %v204
    %v209 = vsel %vm206, %v199, %v208
    %212 = vst [vmem:[#allocation2 + $0x90] sm:$0xff] %v207
    %213 = vst [vmem:[#allocation2 + $0x98] sm:$0xff] %v209
    %214 = vrot.lane.b32.xlu0 %v43, 96
    %v215 = vpop.permute.xlu0 %214
    %216 = vrot.lane.b32.xlu0 %v44, 96
    %v217 = vpop.permute.xlu0 %216
    %218 = vrot.lane.b32.xlu0 %v45, 96
    %v219 = vpop.permute.xlu0 %218
    %v220 = vrot.slane %v215, 4
    %v221 = vrot.slane %v217, 4
    %v222 = vrot.slane %v219, 4
    %v223 = vsel %vm60, %v220, %v221
    %vm224 = vcmask 785408
    %v225 = vsel %vm224, %v215, %v223
    %v226 = vsel %vm60, %v221, %v222
    %v227 = vsel %vm224, %v217, %v226
    %230 = vst [vmem:[#allocation2 + $0xa0] sm:$0xff] %v225
    %231 = vst [vmem:[#allocation2 + $0xa8] sm:$0xff] %v227
    %232 = vrot.lane.b32.xlu0 %v43, 95
    %v233 = vpop.permute.xlu0 %232
    %234 = vrot.lane.b32.xlu0 %v44, 95
    %v235 = vpop.permute.xlu0 %234
    %236 = vrot.lane.b32.xlu0 %v45, 95
    %v237 = vpop.permute.xlu0 %236
    %v238 = vrot.slane %v233, 4
    %v239 = vrot.slane %v235, 4
    %v240 = vrot.slane %v237, 4
    %v241 = vsel %vm60, %v238, %v239
    %vm242 = vcmask 777216
    %v243 = vsel %vm242, %v233, %v241
    %v244 = vsel %vm60, %v239, %v240
    %v245 = vsel %vm242, %v235, %v244
    %248 = vst [vmem:[#allocation2 + $0xb0] sm:$0xff] %v243
    %249 = vst [vmem:[#allocation2 + $0xb8] sm:$0xff] %v245
    %250 = vrot.lane.b32.xlu0 %v43, 94
    %v251 = vpop.permute.xlu0 %250
    %252 = vrot.lane.b32.xlu0 %v44, 94
    %v253 = vpop.permute.xlu0 %252
    %254 = vrot.lane.b32.xlu0 %v45, 94
    %v255 = vpop.permute.xlu0 %254
    %v256 = vrot.slane %v251, 4
    %v257 = vrot.slane %v253, 4
    %v258 = vrot.slane %v255, 4
    %v259 = vsel %vm60, %v256, %v257
    %vm260 = vcmask 769024
    %v261 = vsel %vm260, %v251, %v259
    %v262 = vsel %vm60, %v257, %v258
    %v263 = vsel %vm260, %v253, %v262
    %266 = vst [vmem:[#allocation2 + $0xc0] sm:$0xff] %v261
    %267 = vst [vmem:[#allocation2 + $0xc8] sm:$0xff] %v263
    %268 = vrot.lane.b32.xlu0 %v43, 93
    %v269 = vpop.permute.xlu0 %268
    %270 = vrot.lane.b32.xlu0 %v44, 93
    %v271 = vpop.permute.xlu0 %270
    %272 = vrot.lane.b32.xlu0 %v45, 93
    %v273 = vpop.permute.xlu0 %272
    %v274 = vrot.slane %v269, 4
    %v275 = vrot.slane %v271, 4
    %v276 = vrot.slane %v273, 4
    %v277 = vsel %vm60, %v274, %v275
    %vm278 = vcmask 760832
    %v279 = vsel %vm278, %v269, %v277
    %v280 = vsel %vm60, %v275, %v276
    %v281 = vsel %vm278, %v271, %v280
    %284 = vst [vmem:[#allocation2 + $0xd0] sm:$0xff] %v279
    %285 = vst [vmem:[#allocation2 + $0xd8] sm:$0xff] %v281
    %286 = vrot.lane.b32.xlu0 %v43, 92
    %v287 = vpop.permute.xlu0 %286
    %288 = vrot.lane.b32.xlu0 %v44, 92
    %v289 = vpop.permute.xlu0 %288
    %290 = vrot.lane.b32.xlu0 %v45, 92
    %v291 = vpop.permute.xlu0 %290
    %v292 = vrot.slane %v287, 4
    %v293 = vrot.slane %v289, 4
    %v294 = vrot.slane %v291, 4
    %v295 = vsel %vm60, %v292, %v293
    %vm296 = vcmask 752640
    %v297 = vsel %vm296, %v287, %v295
    %v298 = vsel %vm60, %v293, %v294
    %v299 = vsel %vm296, %v289, %v298
    %302 = vst [vmem:[#allocation2 + $0xe0] sm:$0xff] %v297
    %303 = vst [vmem:[#allocation2 + $0xe8] sm:$0xff] %v299
    %304 = vrot.lane.b32.xlu0 %v43, 80
    %v305 = vpop.permute.xlu0 %304
    %306 = vrot.lane.b32.xlu0 %v44, 80
    %v307 = vpop.permute.xlu0 %306
    %308 = vrot.lane.b32.xlu0 %v45, 80
    %v309 = vpop.permute.xlu0 %308
    %v310 = vrot.slane %v305, 4
    %v311 = vrot.slane %v307, 4
    %v312 = vrot.slane %v309, 4
    %v313 = vsel %vm60, %v310, %v311
    %vm314 = vcmask 654336
    %v315 = vsel %vm314, %v305, %v313
    %v316 = vsel %vm60, %v311, %v312
    %v317 = vsel %vm314, %v307, %v316
    %320 = vst [vmem:[#allocation2 + $0xf0] sm:$0xff] %v315
    %321 = vst [vmem:[#allocation2 + $0xf8] sm:$0xff] %v317
    %322 = vrot.lane.b32.xlu0 %v43, 79
    %v323 = vpop.permute.xlu0 %322
    %324 = vrot.lane.b32.xlu0 %v44, 79
    %v325 = vpop.permute.xlu0 %324
    %326 = vrot.lane.b32.xlu0 %v45, 79
    %v327 = vpop.permute.xlu0 %326
    %v328 = vrot.slane %v323, 4
    %v329 = vrot.slane %v325, 4
    %v330 = vrot.slane %v327, 4
    %v331 = vsel %vm60, %v328, %v329
    %vm332 = vcmask 646144
    %v333 = vsel %vm332, %v323, %v331
    %v334 = vsel %vm60, %v329, %v330
    %v335 = vsel %vm332, %v325, %v334
    %338 = vst [vmem:[#allocation2 + $0x100] sm:$0xff] %v333
    %339 = vst [vmem:[#allocation2 + $0x108] sm:$0xff] %v335
    %340 = vrot.lane.b32.xlu0 %v43, 78
    %v341 = vpop.permute.xlu0 %340
    %342 = vrot.lane.b32.xlu0 %v44, 78
    %v343 = vpop.permute.xlu0 %342
    %344 = vrot.lane.b32.xlu0 %v45, 78
    %v345 = vpop.permute.xlu0 %344
    %v346 = vrot.slane %v341, 4
    %v347 = vrot.slane %v343, 4
    %v348 = vrot.slane %v345, 4
    %v349 = vsel %vm60, %v346, %v347
    %vm350 = vcmask 637952
    %v351 = vsel %vm350, %v341, %v349
    %v352 = vsel %vm60, %v347, %v348
    %v353 = vsel %vm350, %v343, %v352
    %356 = vst [vmem:[#allocation2 + $0x110] sm:$0xff] %v351
    %357 = vst [vmem:[#allocation2 + $0x118] sm:$0xff] %v353
    %358 = vrot.lane.b32.xlu0 %v43, 77
    %v359 = vpop.permute.xlu0 %358
    %360 = vrot.lane.b32.xlu0 %v44, 77
    %v361 = vpop.permute.xlu0 %360
    %362 = vrot.lane.b32.xlu0 %v45, 77
    %v363 = vpop.permute.xlu0 %362
    %v364 = vrot.slane %v359, 4
    %v365 = vrot.slane %v361, 4
    %v366 = vrot.slane %v363, 4
    %v367 = vsel %vm60, %v364, %v365
    %vm368 = vcmask 629760
    %v369 = vsel %vm368, %v359, %v367
    %v370 = vsel %vm60, %v365, %v366
    %v371 = vsel %vm368, %v361, %v370
    %374 = vst [vmem:[#allocation2 + $0x120] sm:$0xff] %v369
    %375 = vst [vmem:[#allocation2 + $0x128] sm:$0xff] %v371
    %376 = vrot.lane.b32.xlu0 %v43, 76
    %v377 = vpop.permute.xlu0 %376
    %378 = vrot.lane.b32.xlu0 %v44, 76
    %v379 = vpop.permute.xlu0 %378
    %380 = vrot.lane.b32.xlu0 %v45, 76
    %v381 = vpop.permute.xlu0 %380
    %v382 = vrot.slane %v377, 4
    %v383 = vrot.slane %v379, 4
    %v384 = vrot.slane %v381, 4
    %v385 = vsel %vm60, %v382, %v383
    %vm386 = vcmask 621568
    %v387 = vsel %vm386, %v377, %v385
    %v388 = vsel %vm60, %v383, %v384
    %v389 = vsel %vm386, %v379, %v388
    %392 = vst [vmem:[#allocation2 + $0x130] sm:$0xff] %v387
    %393 = vst [vmem:[#allocation2 + $0x138] sm:$0xff] %v389
    %394 = vrot.lane.b32.xlu0 %v43, 64
    %v395 = vpop.permute.xlu0 %394
    %396 = vrot.lane.b32.xlu0 %v44, 64
    %v397 = vpop.permute.xlu0 %396
    %398 = vrot.lane.b32.xlu0 %v45, 64
    %v399 = vpop.permute.xlu0 %398
    %v400 = vrot.slane %v395, 4
    %v401 = vrot.slane %v397, 4
    %v402 = vrot.slane %v399, 4
    %v403 = vsel %vm60, %v400, %v401
    %vm404 = vcmask 523264
    %v405 = vsel %vm404, %v395, %v403
    %v406 = vsel %vm60, %v401, %v402
    %v407 = vsel %vm404, %v397, %v406
    %410 = vst [vmem:[#allocation2 + $0x140] sm:$0xff] %v405
    %411 = vst [vmem:[#allocation2 + $0x148] sm:$0xff] %v407
    %412 = vrot.lane.b32.xlu0 %v43, 63
    %v413 = vpop.permute.xlu0 %412
    %414 = vrot.lane.b32.xlu0 %v44, 63
    %v415 = vpop.permute.xlu0 %414
    %416 = vrot.lane.b32.xlu0 %v45, 63
    %v417 = vpop.permute.xlu0 %416
    %v418 = vrot.slane %v413, 4
    %v419 = vrot.slane %v415, 4
    %v420 = vrot.slane %v417, 4
    %v421 = vsel %vm60, %v418, %v419
    %vm422 = vcmask 515072
    %v423 = vsel %vm422, %v413, %v421
    %v424 = vsel %vm60, %v419, %v420
    %v425 = vsel %vm422, %v415, %v424
    %428 = vst [vmem:[#allocation2 + $0x150] sm:$0xff] %v423
    %429 = vst [vmem:[#allocation2 + $0x158] sm:$0xff] %v425
    %430 = vrot.lane.b32.xlu0 %v43, 62
    %v431 = vpop.permute.xlu0 %430
    %432 = vrot.lane.b32.xlu0 %v44, 62
    %v433 = vpop.permute.xlu0 %432
    %434 = vrot.lane.b32.xlu0 %v45, 62
    %v435 = vpop.permute.xlu0 %434
    %v436 = vrot.slane %v431, 4
    %v437 = vrot.slane %v433, 4
    %v438 = vrot.slane %v435, 4
    %v439 = vsel %vm60, %v436, %v437
    %vm440 = vcmask 506880
    %v441 = vsel %vm440, %v431, %v439
    %v442 = vsel %vm60, %v437, %v438
    %v443 = vsel %vm440, %v433, %v442
    %446 = vst [vmem:[#allocation2 + $0x160] sm:$0xff] %v441
    %447 = vst [vmem:[#allocation2 + $0x168] sm:$0xff] %v443
    %448 = vrot.lane.b32.xlu0 %v43, 61
    %v449 = vpop.permute.xlu0 %448
    %450 = vrot.lane.b32.xlu0 %v44, 61
    %v451 = vpop.permute.xlu0 %450
    %452 = vrot.lane.b32.xlu0 %v45, 61
    %v453 = vpop.permute.xlu0 %452
    %v454 = vrot.slane %v449, 4
    %v455 = vrot.slane %v451, 4
    %v456 = vrot.slane %v453, 4
    %v457 = vsel %vm60, %v454, %v455
    %vm458 = vcmask 498688
    %v459 = vsel %vm458, %v449, %v457
    %v460 = vsel %vm60, %v455, %v456
    %v461 = vsel %vm458, %v451, %v460
    %464 = vst [vmem:[#allocation2 + $0x170] sm:$0xff] %v459
    %465 = vst [vmem:[#allocation2 + $0x178] sm:$0xff] %v461
    %466 = vrot.lane.b32.xlu0 %v43, 60
    %v467 = vpop.permute.xlu0 %466
    %468 = vrot.lane.b32.xlu0 %v44, 60
    %v469 = vpop.permute.xlu0 %468
    %470 = vrot.lane.b32.xlu0 %v45, 60
    %v471 = vpop.permute.xlu0 %470
    %v472 = vrot.slane %v467, 4
    %v473 = vrot.slane %v469, 4
    %v474 = vrot.slane %v471, 4
    %v475 = vsel %vm60, %v472, %v473
    %vm476 = vcmask 490496
    %v477 = vsel %vm476, %v467, %v475
    %v478 = vsel %vm60, %v473, %v474
    %v479 = vsel %vm476, %v469, %v478
    %482 = vst [vmem:[#allocation2 + $0x180] sm:$0xff] %v477
    %483 = vst [vmem:[#allocation2 + $0x188] sm:$0xff] %v479
    %v484 = vld [vmem:[#allocation6] sm:$0xff]
    %v485 = vld [vmem:[#allocation6 + $0x8] sm:$0xff]
    %v486 = vld [vmem:[#allocation2] sm:$0xff]
    %v487 = vld [vmem:[#allocation2 + $0x8] sm:$0xff]
    %v488 = vld [vmem:[#allocation2 + $0x10] sm:$0xff]
    %v489 = vld [vmem:[#allocation2 + $0x18] sm:$0xff]
    %v490 = vld [vmem:[#allocation2 + $0x20] sm:$0xff]
    %v491 = vld [vmem:[#allocation2 + $0x28] sm:$0xff]
    %v492 = vld [vmem:[#allocation2 + $0x30] sm:$0xff]
    %v493 = vld [vmem:[#allocation2 + $0x38] sm:$0xff]
    %v494 = vld [vmem:[#allocation2 + $0x40] sm:$0xff]
    %v495 = vld [vmem:[#allocation2 + $0x48] sm:$0xff]
    %v496 = vld [vmem:[#allocation2 + $0x50] sm:$0xff]
    %v497 = vld [vmem:[#allocation2 + $0x58] sm:$0xff]
    %v498 = vld [vmem:[#allocation2 + $0x60] sm:$0xff]
    %v499 = vld [vmem:[#allocation2 + $0x68] sm:$0xff]
    %v500 = vld [vmem:[#allocation2 + $0x70] sm:$0xff]
    %v501 = vld [vmem:[#allocation2 + $0x78] sm:$0xff]
    %v502 = vld [vmem:[#allocation2 + $0x80] sm:$0xff]
    %v503 = vld [vmem:[#allocation2 + $0x88] sm:$0xff]
    %v504 = vld [vmem:[#allocation2 + $0x90] sm:$0xff]
    %v505 = vld [vmem:[#allocation2 + $0x98] sm:$0xff]
    %v506 = vld [vmem:[#allocation2 + $0xa0] sm:$0xff]
    %v507 = vld [vmem:[#allocation2 + $0xa8] sm:$0xff]
    %v508 = vld [vmem:[#allocation2 + $0xb0] sm:$0xff]
    %v509 = vld [vmem:[#allocation2 + $0xb8] sm:$0xff]
    %v510 = vld [vmem:[#allocation2 + $0xc0] sm:$0xff]
    %v511 = vld [vmem:[#allocation2 + $0xc8] sm:$0xff]
    %v512 = vld [vmem:[#allocation2 + $0xd0] sm:$0xff]
    %v513 = vld [vmem:[#allocation2 + $0xd8] sm:$0xff]
    %v514 = vld [vmem:[#allocation2 + $0xe0] sm:$0xff]
    %v515 = vld [vmem:[#allocation2 + $0xe8] sm:$0xff]
    %v516 = vld [vmem:[#allocation2 + $0xf0] sm:$0xff]
    %v517 = vld [vmem:[#allocation2 + $0xf8] sm:$0xff]
    %v518 = vld [vmem:[#allocation2 + $0x100] sm:$0xff]
    %v519 = vld [vmem:[#allocation2 + $0x108] sm:$0xff]
    %v520 = vld [vmem:[#allocation2 + $0x110] sm:$0xff]
    %v521 = vld [vmem:[#allocation2 + $0x118] sm:$0xff]
    %v522 = vld [vmem:[#allocation2 + $0x120] sm:$0xff]
    %v523 = vld [vmem:[#allocation2 + $0x128] sm:$0xff]
    %v524 = vld [vmem:[#allocation2 + $0x130] sm:$0xff]
    %v525 = vld [vmem:[#allocation2 + $0x138] sm:$0xff]
    %v526 = vld [vmem:[#allocation2 + $0x140] sm:$0xff]
    %v527 = vld [vmem:[#allocation2 + $0x148] sm:$0xff]
    %v528 = vld [vmem:[#allocation2 + $0x150] sm:$0xff]
    %v529 = vld [vmem:[#allocation2 + $0x158] sm:$0xff]
    %v530 = vld [vmem:[#allocation2 + $0x160] sm:$0xff]
    %v531 = vld [vmem:[#allocation2 + $0x168] sm:$0xff]
    %v532 = vld [vmem:[#allocation2 + $0x170] sm:$0xff]
    %v533 = vld [vmem:[#allocation2 + $0x178] sm:$0xff]
    %v534 = vld [vmem:[#allocation2 + $0x180] sm:$0xff]
    %v535 = vld [vmem:[#allocation2 + $0x188] sm:$0xff]
    %v538 = vunpack.c.l.b16 %v484
    %v539 = vunpack.c.h.b16 %v484
    %v540 = vunpack.c.l.b16 %v485
    %v541 = vunpack.c.h.b16 %v485
    %v542 = vpack.c.b16 %v540, %v538
    %v543 = vpack.c.b16 %v541, %v539
    %v595 = vunpack.c.l.b16 %v486
    %v596 = vunpack.c.h.b16 %v486
    %v597 = vunpack.c.l.b16 %v487
    %v598 = vunpack.c.h.b16 %v487
    %v599 = vunpack.c.l.b16 %v488
    %v600 = vunpack.c.h.b16 %v488
    %v601 = vunpack.c.l.b16 %v489
    %v602 = vunpack.c.h.b16 %v489
    %v603 = vunpack.c.l.b16 %v490
    %v604 = vunpack.c.h.b16 %v490
    %v605 = vunpack.c.l.b16 %v491
    %v606 = vunpack.c.h.b16 %v491
    %v607 = vunpack.c.l.b16 %v492
    %v608 = vunpack.c.h.b16 %v492
    %v609 = vunpack.c.l.b16 %v493
    %v610 = vunpack.c.h.b16 %v493
    %v611 = vunpack.c.l.b16 %v494
    %v612 = vunpack.c.h.b16 %v494
    %v613 = vunpack.c.l.b16 %v495
    %v614 = vunpack.c.h.b16 %v495
    %v615 = vunpack.c.l.b16 %v496
    %v616 = vunpack.c.h.b16 %v496
    %v617 = vunpack.c.l.b16 %v497
    %v618 = vunpack.c.h.b16 %v497
    %v619 = vunpack.c.l.b16 %v498
    %v620 = vunpack.c.h.b16 %v498
    %v621 = vunpack.c.l.b16 %v499
    %v622 = vunpack.c.h.b16 %v499
    %v623 = vunpack.c.l.b16 %v500
    %v624 = vunpack.c.h.b16 %v500
    %v625 = vunpack.c.l.b16 %v501
    %v626 = vunpack.c.h.b16 %v501
    %v627 = vunpack.c.l.b16 %v502
    %v628 = vunpack.c.h.b16 %v502
    %v629 = vunpack.c.l.b16 %v503
    %v630 = vunpack.c.h.b16 %v503
    %v631 = vunpack.c.l.b16 %v504
    %v632 = vunpack.c.h.b16 %v504
    %v633 = vunpack.c.l.b16 %v505
    %v634 = vunpack.c.h.b16 %v505
    %v635 = vunpack.c.l.b16 %v506
    %v636 = vunpack.c.h.b16 %v506
    %v637 = vunpack.c.l.b16 %v507
    %v638 = vunpack.c.h.b16 %v507
    %v639 = vunpack.c.l.b16 %v508
    %v640 = vunpack.c.h.b16 %v508
    %v641 = vunpack.c.l.b16 %v509
    %v642 = vunpack.c.h.b16 %v509
    %v643 = vunpack.c.l.b16 %v510
    %v644 = vunpack.c.h.b16 %v510
    %v645 = vunpack.c.l.b16 %v511
    %v646 = vunpack.c.h.b16 %v511
    %v647 = vunpack.c.l.b16 %v512
    %v648 = vunpack.c.h.b16 %v512
    %v649 = vunpack.c.l.b16 %v513
    %v650 = vunpack.c.h.b16 %v513
    %v651 = vunpack.c.l.b16 %v514
    %v652 = vunpack.c.h.b16 %v514
    %v653 = vunpack.c.l.b16 %v515
    %v654 = vunpack.c.h.b16 %v515
    %v655 = vunpack.c.l.b16 %v516
    %v656 = vunpack.c.h.b16 %v516
    %v657 = vunpack.c.l.b16 %v517
    %v658 = vunpack.c.h.b16 %v517
    %v659 = vunpack.c.l.b16 %v518
    %v660 = vunpack.c.h.b16 %v518
    %v661 = vunpack.c.l.b16 %v519
    %v662 = vunpack.c.h.b16 %v519
    %v663 = vunpack.c.l.b16 %v520
    %v664 = vunpack.c.h.b16 %v520
    %v665 = vunpack.c.l.b16 %v521
    %v666 = vunpack.c.h.b16 %v521
    %v667 = vunpack.c.l.b16 %v522
    %v668 = vunpack.c.h.b16 %v522
    %v669 = vunpack.c.l.b16 %v523
    %v670 = vunpack.c.h.b16 %v523
    %v671 = vunpack.c.l.b16 %v524
    %v672 = vunpack.c.h.b16 %v524
    %v673 = vunpack.c.l.b16 %v525
    %v674 = vunpack.c.h.b16 %v525
    %v675 = vunpack.c.l.b16 %v526
    %v676 = vunpack.c.h.b16 %v526
    %v677 = vunpack.c.l.b16 %v527
    %v678 = vunpack.c.h.b16 %v527
    %v679 = vunpack.c.l.b16 %v528
    %v680 = vunpack.c.h.b16 %v528
    %v681 = vunpack.c.l.b16 %v529
    %v682 = vunpack.c.h.b16 %v529
    %v683 = vunpack.c.l.b16 %v530
    %v684 = vunpack.c.h.b16 %v530
    %v685 = vunpack.c.l.b16 %v531
    %v686 = vunpack.c.h.b16 %v531
    %v687 = vunpack.c.l.b16 %v532
    %v688 = vunpack.c.h.b16 %v532
    %v689 = vunpack.c.l.b16 %v533
    %v690 = vunpack.c.h.b16 %v533
    %v691 = vunpack.c.l.b16 %v534
    %v692 = vunpack.c.h.b16 %v534
    %v693 = vunpack.c.l.b16 %v535
    %v694 = vunpack.c.h.b16 %v535
    %v695 = vpack.c.b16 %v599, %v595
    %v696 = vpack.c.b16 %v600, %v596
    %v697 = vpack.c.b16 %v601, %v597
    %v698 = vpack.c.b16 %v602, %v598
    %v699 = vpack.c.b16 %v607, %v603
    %v700 = vpack.c.b16 %v608, %v604
    %v701 = vpack.c.b16 %v609, %v605
    %v702 = vpack.c.b16 %v610, %v606
    %v703 = vpack.c.b16 %v615, %v611
    %v704 = vpack.c.b16 %v616, %v612
    %v705 = vpack.c.b16 %v617, %v613
    %v706 = vpack.c.b16 %v618, %v614
    %v707 = vpack.c.b16 %v623, %v619
    %v708 = vpack.c.b16 %v624, %v620
    %v709 = vpack.c.b16 %v625, %v621
    %v710 = vpack.c.b16 %v626, %v622
    %v711 = vpack.c.b16 %v631, %v627
    %v712 = vpack.c.b16 %v632, %v628
    %v713 = vpack.c.b16 %v633, %v629
    %v714 = vpack.c.b16 %v634, %v630
    %v715 = vpack.c.b16 %v639, %v635
    %v716 = vpack.c.b16 %v640, %v636
    %v717 = vpack.c.b16 %v641, %v637
    %v718 = vpack.c.b16 %v642, %v638
    %v719 = vpack.c.b16 %v647, %v643
    %v720 = vpack.c.b16 %v648, %v644
    %v721 = vpack.c.b16 %v649, %v645
    %v722 = vpack.c.b16 %v650, %v646
    %v723 = vpack.c.b16 %v655, %v651
    %v724 = vpack.c.b16 %v656, %v652
    %v725 = vpack.c.b16 %v657, %v653
    %v726 = vpack.c.b16 %v658, %v654
    %v727 = vpack.c.b16 %v663, %v659
    %v728 = vpack.c.b16 %v664, %v660
    %v729 = vpack.c.b16 %v665, %v661
    %v730 = vpack.c.b16 %v666, %v662
    %v731 = vpack.c.b16 %v671, %v667
    %v732 = vpack.c.b16 %v672, %v668
    %v733 = vpack.c.b16 %v673, %v669
    %v734 = vpack.c.b16 %v674, %v670
    %v735 = vpack.c.b16 %v679, %v675
    %v736 = vpack.c.b16 %v680, %v676
    %v737 = vpack.c.b16 %v681, %v677
    %v738 = vpack.c.b16 %v682, %v678
    %v739 = vpack.c.b16 %v687, %v683
    %v740 = vpack.c.b16 %v688, %v684
    %v741 = vpack.c.b16 %v689, %v685
    %v742 = vpack.c.b16 %v690, %v686
    %v743 = vpack.c.b16 %v691, %v691
    %v744 = vpack.c.b16 %v692, %v692
    %v745 = vpack.c.b16 %v693, %v693
    %v746 = vpack.c.b16 %v694, %v694
    %vm795 = vcmask 588800
    %v797 = vsel %vm795, %v543, 0
    %vm799 = vcmask 1043456
    %v801 = vsel %vm799, %v743, 0
    %v804 = vsel %vm799, %v744, 0
    %v807 = vsel %vm799, %v745, 0
    %v810 = vsel %vm799, %v746, 0
    %812 = vmatpush.bf16.msra.mxu0 %v723
    %813 = vmatpush.bf16.msra.mxu0 %v719
    %814 = vmatpush.bf16.msra.mxu0 %v715
    %815 = vmatpush.bf16.msra.mxu0 %v711
    %816 = vmatpush.bf16.msra.mxu0 %v707
    %817 = vmatpush.bf16.msra.mxu0 %v703
    %818 = vmatpush.bf16.msra.mxu0 %v699
    %819 = vmatpush.bf16.msra.mxu0 %v695
    %820 = vmatmul.bf16.gmra.mxu0 %v542
    %v821 = vpop.f32.mrf.mxu0
    %v822 = vadd.f32 0.0, %v821
    %v823 = vpop.f32.mrf.mxu0
    %v824 = vadd.f32 0.0, %v823
    %825 = vdwg.mxu0
    %826 = vmatpush.bf16.msra.mxu0 0
    %827 = vmatpush.bf16.msra.mxu0 0
    %828 = vmatpush.bf16.msra.mxu0 0
    %829 = vmatpush.bf16.msra.mxu0 %v801
    %830 = vmatpush.bf16.msra.mxu0 %v739
    %831 = vmatpush.bf16.msra.mxu0 %v735
    %832 = vmatpush.bf16.msra.mxu0 %v731
    %833 = vmatpush.bf16.msra.mxu0 %v727
    %834 = vmatmul.bf16.gmra.mxu0 %v797
    %v835 = vpop.f32.mrf.mxu0
    %v836 = vadd.f32 %v822, %v835
    %v837 = vpop.f32.mrf.mxu0
    %v838 = vadd.f32 %v824, %v837
    %839 = vdwg.mxu0
    %840 = vmatpush.bf16.msra.mxu0 %v724
    %841 = vmatpush.bf16.msra.mxu0 %v720
    %842 = vmatpush.bf16.msra.mxu0 %v716
    %843 = vmatpush.bf16.msra.mxu0 %v712
    %844 = vmatpush.bf16.msra.mxu0 %v708
    %845 = vmatpush.bf16.msra.mxu0 %v704
    %846 = vmatpush.bf16.msra.mxu0 %v700
    %847 = vmatpush.bf16.msra.mxu0 %v696
    %848 = vmatmul.bf16.gmra.mxu0 %v542
    %v849 = vpop.f32.mrf.mxu0
    %v850 = vadd.f32 0.0, %v849
    %v851 = vpop.f32.mrf.mxu0
    %v852 = vadd.f32 0.0, %v851
    %853 = vdwg.mxu0
    %854 = vmatpush.bf16.msra.mxu0 0
    %855 = vmatpush.bf16.msra.mxu0 0
    %856 = vmatpush.bf16.msra.mxu0 0
    %857 = vmatpush.bf16.msra.mxu0 %v804
    %858 = vmatpush.bf16.msra.mxu0 %v740
    %859 = vmatpush.bf16.msra.mxu0 %v736
    %860 = vmatpush.bf16.msra.mxu0 %v732
    %861 = vmatpush.bf16.msra.mxu0 %v728
    %862 = vmatmul.bf16.gmra.mxu0 %v797
    %v863 = vpop.f32.mrf.mxu0
    %v864 = vadd.f32 %v850, %v863
    %v865 = vpop.f32.mrf.mxu0
    %v866 = vadd.f32 %v852, %v865
    %867 = vdwg.mxu0
    %868 = vmatpush.bf16.msra.mxu0 %v725
    %869 = vmatpush.bf16.msra.mxu0 %v721
    %870 = vmatpush.bf16.msra.mxu0 %v717
    %871 = vmatpush.bf16.msra.mxu0 %v713
    %872 = vmatpush.bf16.msra.mxu0 %v709
    %873 = vmatpush.bf16.msra.mxu0 %v705
    %874 = vmatpush.bf16.msra.mxu0 %v701
    %875 = vmatpush.bf16.msra.mxu0 %v697
    %876 = vmatmul.bf16.gmra.mxu0 %v542
    %v877 = vpop.f32.mrf.mxu0
    %v878 = vadd.f32 0.0, %v877
    %v879 = vpop.f32.mrf.mxu0
    %v880 = vadd.f32 0.0, %v879
    %881 = vdwg.mxu0
    %882 = vmatpush.bf16.msra.mxu0 0
    %883 = vmatpush.bf16.msra.mxu0 0
    %884 = vmatpush.bf16.msra.mxu0 0
    %885 = vmatpush.bf16.msra.mxu0 %v807
    %886 = vmatpush.bf16.msra.mxu0 %v741
    %887 = vmatpush.bf16.msra.mxu0 %v737
    %888 = vmatpush.bf16.msra.mxu0 %v733
    %889 = vmatpush.bf16.msra.mxu0 %v729
    %890 = vmatmul.bf16.gmra.mxu0 %v797
    %v891 = vpop.f32.mrf.mxu0
    %v892 = vadd.f32 %v878, %v891
    %v893 = vpop.f32.mrf.mxu0
    %v894 = vadd.f32 %v880, %v893
    %895 = vdwg.mxu0
    %896 = vmatpush.bf16.msra.mxu0 %v726
    %897 = vmatpush.bf16.msra.mxu0 %v722
    %898 = vmatpush.bf16.msra.mxu0 %v718
    %899 = vmatpush.bf16.msra.mxu0 %v714
    %900 = vmatpush.bf16.msra.mxu0 %v710
    %901 = vmatpush.bf16.msra.mxu0 %v706
    %902 = vmatpush.bf16.msra.mxu0 %v702
    %903 = vmatpush.bf16.msra.mxu0 %v698
    %904 = vmatmul.bf16.gmra.mxu0 %v542
    %v905 = vpop.f32.mrf.mxu0
    %v906 = vadd.f32 0.0, %v905
    %v907 = vpop.f32.mrf.mxu0
    %v908 = vadd.f32 0.0, %v907
    %909 = vdwg.mxu0
    %910 = vmatpush.bf16.msra.mxu0 0
    %911 = vmatpush.bf16.msra.mxu0 0
    %912 = vmatpush.bf16.msra.mxu0 0
    %913 = vmatpush.bf16.msra.mxu0 %v810
    %914 = vmatpush.bf16.msra.mxu0 %v742
    %915 = vmatpush.bf16.msra.mxu0 %v738
    %916 = vmatpush.bf16.msra.mxu0 %v734
    %917 = vmatpush.bf16.msra.mxu0 %v730
    %918 = vmatmul.bf16.gmra.mxu0 %v797
    %v919 = vpop.f32.mrf.mxu0
    %v920 = vadd.f32 %v906, %v919
    %v921 = vpop.f32.mrf.mxu0
    %v922 = vadd.f32 %v908, %v921
    %923 = vdwg.mxu0
    %924 = vst [vmem:[#allocation8] sm:$0xff] %v836
    %925 = vst [vmem:[#allocation8 + $0x8] sm:$0xff] %v864
    %926 = vst [vmem:[#allocation8 + $0x10] sm:$0xff] %v892
    %927 = vst [vmem:[#allocation8 + $0x18] sm:$0xff] %v920
    %928 = vst [vmem:[#allocation8 + $0x20] sm:$0xff] %v838
    %929 = vst [vmem:[#allocation8 + $0x28] sm:$0xff] %v866
    %930 = vst [vmem:[#allocation8 + $0x30] sm:$0xff] %v894
    %931 = vst [vmem:[#allocation8 + $0x38] sm:$0xff] %v922
    // Predicated region
    $region18: #{tpu_custom_call.1} parent=1 // pred_check
      _
    $region19: #{tpu_custom_call.1} parent=1 // pred_check_branch
      %933 = sbr.rel (0) target = $region21
    $region20: #{tpu_custom_call.1} parent=1 // pred_region
      %935 = vsyncadd [#allocation5], 0
      %s936 = sshll.u32 [#allocation8], 4
      %s937 = int_to_ptr.vmem [resolvable:$true] %s936
      %s938 = sshll.u32 %s2, 4
      %s939 = int_to_ptr.hbm [resolvable:$true] %s938
      %944 = dma.vmem_to_hbm [thread:$0]  %s937, 1024, %s939, [#allocation5], 512, 512, 32
    $region21: #{tpu_custom_call.1} parent=1 // pred_fallthru
      _
    // Predicated region
    $region22: #{tpu_custom_call.1} parent=1 // pred_check
      _
    $region23: #{tpu_custom_call.1} parent=1 // pred_check_branch
      %946 = sbr.rel (0) target = $region25
    $region24: #{tpu_custom_call.1} parent=1 // pred_region
      %948 = dma.done [#allocation5], 1024
    $region25: #{tpu_custom_call.1} parent=1 // pred_fallthru
      _
    %949 = vsyncpa [#allocation4], 1
    %950 = vsyncpa [#allocation7], 1
    %951 = vsyncpa [#allocation5], 1

</llo_original>
